<compile_context>
chip_gen: v6e
topology: v6e:2x2x1
jax: 0.10.0
libtpu: 0.0.40
codegen_flags: <defaults>
</compile_context>

<pallas_src>
import jax
import jax.numpy as jnp
from jax.experimental import pallas as pl
from jax.experimental.pallas import tpu as pltpu


# Tile caps (bf16 operands / f32 accum): per-step live VMEM ~4-5 MiB, safe on
# all generations (v5e/v6e/v7x). Re-derive if dim_head or C grow a lot.
TQ_CAP = 512
TK_CAP = 512


# ------------------------------ fused kernel ------------------------------- #

def fused_attention_kernel(x_q_ref, x_kv_ref, wq_ref, wk_ref, wv_ref,
                           wo_ref, bo_ref, o_ref,
                           q_sc, m_sc, l_sc, acc_sc):
    # Grid: (b, qi, h, ki).  Output block (b, qi) is resident across (h, ki).
    h = pl.program_id(2)
    ki = pl.program_id(3)
    n_kv = pl.num_programs(3)

    # First visit of this output block: initialize with the output-proj bias.
    @pl.when(jnp.logical_and(h == 0, ki == 0))
    def _():
        o_ref[0] = jnp.broadcast_to(bo_ref[...],
                                    (o_ref.shape[1], o_ref.shape[2]))

    # Start of a new head: project the Q tile (scale pre-folded into wq) and
    # reset the online-softmax state.
    @pl.when(ki == 0)
    def _():
        q_sc[...] = jnp.dot(wq_ref[0], x_q_ref[0],
                            preferred_element_type=jnp.float32
                            ).astype(q_sc.dtype)                  # (d, tq) bf16
        m_sc[...] = jnp.full_like(m_sc, -jnp.inf)
        l_sc[...] = jnp.zeros_like(l_sc)
        acc_sc[...] = jnp.zeros_like(acc_sc)

    # Project K/V for this kv tile (bf16 MXU operands, f32 accumulation).
    x_kv = x_kv_ref[0]                                            # (C, tk) bf16
    k = jnp.dot(wk_ref[0], x_kv,
                preferred_element_type=jnp.float32).astype(jnp.bfloat16)
    v = jnp.dot(wv_ref[0], x_kv,
                preferred_element_type=jnp.float32).astype(jnp.bfloat16)

    # Scores s[j, i] = sum_d k[d, j] * q[d, i]  -> (tk, tq).
    # Key axis on sublanes, query axis on lanes: the big (tk, tq) matrix stays
    # in canonical position for the PV matmul (only small (d, *) operands are
    # ever "transposed" by the dot dimension numbers).
    s = jax.lax.dot_general(k, q_sc[...], (((0,), (0,)), ((), ())),
                            preferred_element_type=jnp.float32)

    # Online softmax over the key axis (axis 0); stats in f32.
    m_prev = m_sc[...]                                            # (1, tq)
    m_new = jnp.maximum(m_prev, jnp.max(s, axis=0, keepdims=True))
    p = jnp.exp(s - m_new)                                        # (tk, tq) f32
    alpha = jnp.exp(m_prev - m_new)                               # (1, tq)
    l_sc[...] = alpha * l_sc[...] + jnp.sum(p, axis=0, keepdims=True)
    acc_sc[...] = alpha * acc_sc[...] + jax.lax.dot_general(
        v, p.astype(jnp.bfloat16), (((1,), (0,)), ((), ())),
        preferred_element_type=jnp.float32)                       # (d, tq)
    m_sc[...] = m_new

    # End of this head's kv loop: normalize and fold the head's contribution
    # into the (resident) output block via the per-head slice of w_out.
    @pl.when(ki == n_kv - 1)
    def _():
        out_h = acc_sc[...] * pl.reciprocal(l_sc[...], approx=True)   # (d, tq)
        o_ref[0] += jnp.dot(wo_ref[0], out_h.astype(jnp.bfloat16),
                            preferred_element_type=jnp.float32)


# ---------------------------- parameter prep -------------------------------- #

def prepare_params(params, *, heads, dim_head):
    """One-time weight prep: fold softmax scale, split per head, cast to bf16."""
    hidden = heads * dim_head
    scale = dim_head ** (-0.5)
    w_qkv = params["w_qkv"]                      # (3*hidden, C)
    C = w_qkv.shape[1]
    w_q = (w_qkv[:hidden] * scale).reshape(heads, dim_head, C)
    w_k = w_qkv[hidden:2 * hidden].reshape(heads, dim_head, C)
    w_v = w_qkv[2 * hidden:].reshape(heads, dim_head, C)
    # (C, hidden) -> (heads, C, dim_head) so each head's out-proj slice is a block.
    w_o = params["w_out"].reshape(C, heads, dim_head).transpose(1, 0, 2)
    return {
        "w_q": w_q.astype(jnp.bfloat16),
        "w_k": w_k.astype(jnp.bfloat16),
        "w_v": w_v.astype(jnp.bfloat16),
        "w_o": w_o.astype(jnp.bfloat16),
        "b_o": params["b_out"].astype(jnp.float32),   # (C, 1), kept f32
    }


def _pick_tile(n, cap):
    """Largest tile <= cap that divides n (multiples of 128 preferred)."""
    if n <= cap:
        return n
    t = (cap // 128) * 128
    while t >= 128:
        if n % t == 0:
            return t
        t -= 128
    return n  # fallback: no tiling along this axis


# -------------------------------- wrapper ----------------------------------- #

def attention_forward(x, prepped, *, heads, dim_head,
                      tq_cap=TQ_CAP, tk_cap=TK_CAP):
    B, C, H, W = x.shape
    N = H * W

    # Pad the query/output axis up to a multiple of 128 for dense lane stores.
    Nq = ((N + 127) // 128) * 128
    tq = _pick_tile(Nq, tq_cap)    # Nq is a multiple of 128 -> always succeeds
    tk = _pick_tile(N, tk_cap)
    n_q, n_kv = Nq // tq, N // tk

    x_flat = x.reshape(B, C, N).astype(jnp.bfloat16)
    x_q = x_flat if Nq == N else jnp.pad(x_flat, ((0, 0), (0, 0), (0, Nq - N)))

    y = pl.pallas_call(
        fused_attention_kernel,
        out_shape=jax.ShapeDtypeStruct((B, C, Nq), jnp.float32),
        grid=(B, n_q, heads, n_kv),
        in_specs=[
            pl.BlockSpec((1, C, tq), lambda b, qi, h, ki: (b, 0, qi)),        # x (queries)
            pl.BlockSpec((1, C, tk), lambda b, qi, h, ki: (b, 0, ki)),        # x (keys/values)
            pl.BlockSpec((1, dim_head, C), lambda b, qi, h, ki: (h, 0, 0)),   # w_q[h]
            pl.BlockSpec((1, dim_head, C), lambda b, qi, h, ki: (h, 0, 0)),   # w_k[h]
            pl.BlockSpec((1, dim_head, C), lambda b, qi, h, ki: (h, 0, 0)),   # w_v[h]
            pl.BlockSpec((1, C, dim_head), lambda b, qi, h, ki: (h, 0, 0)),   # w_o[h]
            pl.BlockSpec((C, 1), lambda b, qi, h, ki: (0, 0)),                # b_o
        ],
        out_specs=pl.BlockSpec((1, C, tq), lambda b, qi, h, ki: (b, 0, qi)),
        scratch_shapes=[
            pltpu.VMEM((dim_head, tq), jnp.bfloat16),   # q tile (per head)
            pltpu.VMEM((1, tq), jnp.float32),           # running max
            pltpu.VMEM((1, tq), jnp.float32),           # running sum
            pltpu.VMEM((dim_head, tq), jnp.float32),    # unnormalized PV accum
        ],
        compiler_params=pltpu.CompilerParams(
            dimension_semantics=("parallel", "parallel",
                                 "arbitrary", "arbitrary")),
    )(x_q, x_flat, prepped["w_q"], prepped["w_k"], prepped["w_v"],
      prepped["w_o"], prepped["b_o"])

    if Nq != N:
        y = y[:, :, :N]
    return y.reshape(B, C, H, W)


# --------------------------- pure-JAX reference ----------------------------- #

def attention_reference(x, params, *, heads, dim_head):
    B, C, H, W = x.shape
    N = H * W
    hidden = heads * dim_head
    scale = dim_head ** (-0.5)
    xf = x.reshape(B, C, N)
    qkv = jnp.einsum('oc,bcn->bon', params["w_qkv"], xf)
    q, k, v = jnp.split(qkv, 3, axis=1)
    q = q.reshape(B, heads, dim_head, N) * scale
    k = k.reshape(B, heads, dim_head, N)
    v = v.reshape(B, heads, dim_head, N)
    sim = jnp.einsum('bhdi,bhdj->bhij', q, k)
    sim = sim - jnp.max(sim, axis=-1, keepdims=True)
    attn = jax.nn.softmax(sim, axis=-1)
    out = jnp.einsum('bhij,bhdj->bhid', attn, v)
    out = out.transpose(0, 1, 3, 2).reshape(B, hidden, N)
    y = jnp.einsum('oc,bcn->bon', params["w_out"], out) + params["b_out"][None]
    return y.reshape(B, C, H, W)


# ---------------------------------- main ------------------------------------ #

if __name__ == "__main__":
    # Mirrors Attention(dim=8, heads=4, dim_head=32) on a small 8x8 feature map.
    dim, heads, dim_head = 8, 4, 32
    hidden = heads * dim_head
    B, H, W = 2, 8, 8

    key = jax.random.PRNGKey(0)
    kx, kw1, kw2, kb2 = jax.random.split(key, 4)

    x = jax.random.normal(kx, (B, dim, H, W), dtype=jnp.float32)

    # Deterministic synthetic parameters (Conv2d 1x1 weights squeezed to 2-D).
    params = {
        "w_qkv": 0.05 * jax.random.normal(kw1, (3 * hidden, dim), jnp.float32),
        "w_out": 0.05 * jax.random.normal(kw2, (dim, hidden), jnp.float32),
        "b_out": 0.05 * jax.random.normal(kb2, (dim, 1), jnp.float32),
    }

    # One-time weight prep (scale fold, per-head layout, bf16 cast).
    prepped = prepare_params(params, heads=heads, dim_head=dim_head)

    y = attention_forward(x, prepped, heads=heads, dim_head=dim_head)
    y = jax.block_until_ready(y)

    y_ref = attention_reference(x, params, heads=heads, dim_head=dim_head)
    assert y.shape == (B, dim, H, W)
    # bf16 MXU operands + approx-reciprocal softmax -> modestly loosened tol
    # vs the f32 reference.
    assert jnp.allclose(y, y_ref, rtol=5e-3, atol=5e-3), "mismatch vs reference"

    print("KERNEL_OK")
</pallas_src>

<mosaic_0001>
module attributes {stable_mosaic.version = 11 : i64} {
  func.func @fused_attention_kernel(%arg0: i32, %arg1: i32, %arg2: i32, %arg3: i32, %arg4: memref<1x8x128xbf16, #tpu.memory_space<vmem>>, %arg5: memref<1x8x64xbf16, #tpu.memory_space<vmem>>, %arg6: memref<1x32x8xbf16, #tpu.memory_space<vmem>>, %arg7: memref<1x32x8xbf16, #tpu.memory_space<vmem>>, %arg8: memref<1x32x8xbf16, #tpu.memory_space<vmem>>, %arg9: memref<1x8x32xbf16, #tpu.memory_space<vmem>>, %arg10: memref<8x1xf32, #tpu.memory_space<vmem>>, %arg11: memref<1x8x128xf32, #tpu.memory_space<vmem>>, %arg12: memref<32x128xbf16, #tpu.memory_space<vmem>>, %arg13: memref<1x128xf32, #tpu.memory_space<vmem>>, %arg14: memref<1x128xf32, #tpu.memory_space<vmem>>, %arg15: memref<32x128xf32, #tpu.memory_space<vmem>>) attributes {dimension_semantics = [#tpu.dimension_semantics<parallel>, #tpu.dimension_semantics<parallel>, #tpu.dimension_semantics<arbitrary>, #tpu.dimension_semantics<arbitrary>], iteration_bounds = array<i64: 2, 1, 4, 1>, scalar_prefetch = 0 : i64, scratch_operands = 4 : i64, tpu.core_type = #tpu.core_type<tc>, window_params = [{transform_indices = @transform_0, window_bounds = array<i64: 1, 8, 128>}, {transform_indices = @transform_1, window_bounds = array<i64: 1, 8, 64>}, {transform_indices = @transform_2, window_bounds = array<i64: 1, 32, 8>}, {transform_indices = @transform_3, window_bounds = array<i64: 1, 32, 8>}, {transform_indices = @transform_4, window_bounds = array<i64: 1, 32, 8>}, {transform_indices = @transform_5, window_bounds = array<i64: 1, 8, 32>}, {pipeline_mode = #tpu.pipeline_mode<synchronous>, transform_indices = @transform_6, window_bounds = array<i64: 8, 1>}, {transform_indices = @transform_7, window_bounds = array<i64: 1, 8, 128>}]} {
    %c0_i32 = arith.constant 0 : i32
    %0 = arith.cmpi eq, %arg2, %c0_i32 : i32
    %c0_i32_0 = arith.constant 0 : i32
    %1 = arith.cmpi eq, %arg3, %c0_i32_0 : i32
    %2 = arith.andi %0, %1 : i1
    %3 = arith.extui %2 : i1 to i32
    %c0_i32_1 = arith.constant 0 : i32
    %4 = arith.cmpi ne, %3, %c0_i32_1 : i32
    scf.if %4 {
      %c0_33 = arith.constant 0 : index
      %c0_34 = arith.constant 0 : index
      %46 = vector.load %arg10[%c0_33, %c0_34] : memref<8x1xf32, #tpu.memory_space<vmem>>, vector<8x1xf32>
      %47 = vector.shape_cast %46 : vector<8x1xf32> to vector<8x1xf32>
      %48 = vector.broadcast %47 : vector<8x1xf32> to vector<8x128xf32>
      %c0_35 = arith.constant 0 : index
      %c0_36 = arith.constant 0 : index
      %c0_37 = arith.constant 0 : index
      %49 = vector.load %arg11[%c0_35, %c0_36, %c0_37] : memref<1x8x128xf32, #tpu.memory_space<vmem>>, vector<1x8x128xf32>
      %50 = vector.shape_cast %49 : vector<1x8x128xf32> to vector<8x128xf32>
      %51 = vector.shape_cast %48 : vector<8x128xf32> to vector<1x8x128xf32>
      tpu.vector_store %arg11[%c0_35, %c0_36, %c0_37], %51 {strides = array<i32>} : memref<1x8x128xf32, #tpu.memory_space<vmem>>, vector<1x8x128xf32>,
    } else {
    }
    %c0_i32_2 = arith.constant 0 : i32
    %5 = arith.cmpi eq, %arg3, %c0_i32_2 : i32
    %6 = arith.extui %5 : i1 to i32
    %c0_i32_3 = arith.constant 0 : i32
    %7 = arith.cmpi ne, %6, %c0_i32_3 : i32
    scf.if %7 {
      %c0_33 = arith.constant 0 : index
      %c0_34 = arith.constant 0 : index
      %c0_35 = arith.constant 0 : index
      %46 = vector.load %arg6[%c0_33, %c0_34, %c0_35] : memref<1x32x8xbf16, #tpu.memory_space<vmem>>, vector<1x32x8xbf16>
      %47 = vector.shape_cast %46 : vector<1x32x8xbf16> to vector<32x8xbf16>
      %c0_36 = arith.constant 0 : index
      %c0_37 = arith.constant 0 : index
      %c0_38 = arith.constant 0 : index
      %48 = vector.load %arg4[%c0_36, %c0_37, %c0_38] : memref<1x8x128xbf16, #tpu.memory_space<vmem>>, vector<1x8x128xbf16>
      %49 = vector.shape_cast %48 : vector<1x8x128xbf16> to vector<8x128xbf16>
      %cst_39 = arith.constant dense<0.000000e+00> : vector<32x128xf32>
      %50 = tpu.matmul %47, %49, %cst_39 {dimension_numbers = #tpu.dot_dimension_numbers<[1], [0], [0], [1], [0, 0, 1, 1], [], []>} : vector<32x8xbf16>, vector<8x128xbf16>, vector<32x128xf32> -> vector<32x128xf32>
      %51 = arith.truncf %50 : vector<32x128xf32> to vector<32x128xbf16>
      %c0_40 = arith.constant 0 : index
      %c0_41 = arith.constant 0 : index
      %52 = vector.load %arg12[%c0_40, %c0_41] : memref<32x128xbf16, #tpu.memory_space<vmem>>, vector<32x128xbf16>
      tpu.vector_store %arg12[%c0_40, %c0_41], %51 {strides = array<i32>} : memref<32x128xbf16, #tpu.memory_space<vmem>>, vector<32x128xbf16>,
      %cst_42 = arith.constant 0xFF800000 : f32
      %53 = vector.broadcast %cst_42 : f32 to vector<1x128xf32>
      %c0_43 = arith.constant 0 : index
      %c0_44 = arith.constant 0 : index
      %54 = vector.load %arg13[%c0_43, %c0_44] : memref<1x128xf32, #tpu.memory_space<vmem>>, vector<1x128xf32>
      tpu.vector_store %arg13[%c0_43, %c0_44], %53 {strides = array<i32>} : memref<1x128xf32, #tpu.memory_space<vmem>>, vector<1x128xf32>,
      %cst_45 = arith.constant 0.000000e+00 : f32
      %55 = vector.broadcast %cst_45 : f32 to vector<1x128xf32>
      %c0_46 = arith.constant 0 : index
      %c0_47 = arith.constant 0 : index
      %56 = vector.load %arg14[%c0_46, %c0_47] : memref<1x128xf32, #tpu.memory_space<vmem>>, vector<1x128xf32>
      tpu.vector_store %arg14[%c0_46, %c0_47], %55 {strides = array<i32>} : memref<1x128xf32, #tpu.memory_space<vmem>>, vector<1x128xf32>,
      %cst_48 = arith.constant 0.000000e+00 : f32
      %57 = vector.broadcast %cst_48 : f32 to vector<32x128xf32>
      %c0_49 = arith.constant 0 : index
      %c0_50 = arith.constant 0 : index
      %58 = vector.load %arg15[%c0_49, %c0_50] : memref<32x128xf32, #tpu.memory_space<vmem>>, vector<32x128xf32>
      tpu.vector_store %arg15[%c0_49, %c0_50], %57 {strides = array<i32>} : memref<32x128xf32, #tpu.memory_space<vmem>>, vector<32x128xf32>,
    } else {
    }
    %c0 = arith.constant 0 : index
    %c0_4 = arith.constant 0 : index
    %c0_5 = arith.constant 0 : index
    %8 = vector.load %arg5[%c0, %c0_4, %c0_5] : memref<1x8x64xbf16, #tpu.memory_space<vmem>>, vector<1x8x64xbf16>
    %9 = vector.shape_cast %8 : vector<1x8x64xbf16> to vector<8x64xbf16>
    %c0_6 = arith.constant 0 : index
    %c0_7 = arith.constant 0 : index
    %c0_8 = arith.constant 0 : index
    %10 = vector.load %arg7[%c0_6, %c0_7, %c0_8] : memref<1x32x8xbf16, #tpu.memory_space<vmem>>, vector<1x32x8xbf16>
    %11 = vector.shape_cast %10 : vector<1x32x8xbf16> to vector<32x8xbf16>
    %cst = arith.constant dense<0.000000e+00> : vector<32x64xf32>
    %12 = tpu.matmul %11, %9, %cst {dimension_numbers = #tpu.dot_dimension_numbers<[1], [0], [0], [1], [0, 0, 1, 1], [], []>} : vector<32x8xbf16>, vector<8x64xbf16>, vector<32x64xf32> -> vector<32x64xf32>
    %13 = arith.truncf %12 : vector<32x64xf32> to vector<32x64xbf16>
    %c0_9 = arith.constant 0 : index
    %c0_10 = arith.constant 0 : index
    %c0_11 = arith.constant 0 : index
    %14 = vector.load %arg8[%c0_9, %c0_10, %c0_11] : memref<1x32x8xbf16, #tpu.memory_space<vmem>>, vector<1x32x8xbf16>
    %15 = vector.shape_cast %14 : vector<1x32x8xbf16> to vector<32x8xbf16>
    %cst_12 = arith.constant dense<0.000000e+00> : vector<32x64xf32>
    %16 = tpu.matmul %15, %9, %cst_12 {dimension_numbers = #tpu.dot_dimension_numbers<[1], [0], [0], [1], [0, 0, 1, 1], [], []>} : vector<32x8xbf16>, vector<8x64xbf16>, vector<32x64xf32> -> vector<32x64xf32>
    %17 = arith.truncf %16 : vector<32x64xf32> to vector<32x64xbf16>
    %c0_13 = arith.constant 0 : index
    %c0_14 = arith.constant 0 : index
    %18 = vector.load %arg12[%c0_13, %c0_14] : memref<32x128xbf16, #tpu.memory_space<vmem>>, vector<32x128xbf16>
    %cst_15 = arith.constant dense<0.000000e+00> : vector<64x128xf32>
    %19 = tpu.matmul %13, %18, %cst_15 {dimension_numbers = #tpu.dot_dimension_numbers<[0], [0], [1], [1], [0, 1, 1, 1], [], []>} : vector<32x64xbf16>, vector<32x128xbf16>, vector<64x128xf32> -> vector<64x128xf32>
    %c0_16 = arith.constant 0 : index
    %c0_17 = arith.constant 0 : index
    %20 = vector.load %arg13[%c0_16, %c0_17] : memref<1x128xf32, #tpu.memory_space<vmem>>, vector<1x128xf32>
    %cst_18 = arith.constant dense<0xFF800000> : vector<128xf32>
    %21 = vector.multi_reduction <maximumf>, %19, %cst_18 [0] : vector<64x128xf32> to vector<128xf32>
    %22 = vector.shape_cast %21 : vector<128xf32> to vector<1x128xf32>
    %23 = arith.maximumf %20, %22 : vector<1x128xf32>
    %24 = vector.broadcast %23 : vector<1x128xf32> to vector<64x128xf32>
    %25 = arith.subf %19, %24 : vector<64x128xf32>
    %26 = math.exp %25 : vector<64x128xf32>
    %27 = arith.subf %20, %23 : vector<1x128xf32>
    %28 = math.exp %27 : vector<1x128xf32>
    %c0_19 = arith.constant 0 : index
    %c0_20 = arith.constant 0 : index
    %29 = vector.load %arg14[%c0_19, %c0_20] : memref<1x128xf32, #tpu.memory_space<vmem>>, vector<1x128xf32>
    %30 = arith.mulf %28, %29 : vector<1x128xf32>
    %cst_21 = arith.constant dense<0.000000e+00> : vector<128xf32>
    %31 = vector.multi_reduction <add>, %26, %cst_21 [0] : vector<64x128xf32> to vector<128xf32>
    %32 = vector.shape_cast %31 : vector<128xf32> to vector<1x128xf32>
    %33 = arith.addf %30, %32 : vector<1x128xf32>
    %c0_22 = arith.constant 0 : index
    %c0_23 = arith.constant 0 : index
    %34 = vector.load %arg14[%c0_22, %c0_23] : memref<1x128xf32, #tpu.memory_space<vmem>>, vector<1x128xf32>
    tpu.vector_store %arg14[%c0_22, %c0_23], %33 {strides = array<i32>} : memref<1x128xf32, #tpu.memory_space<vmem>>, vector<1x128xf32>,
    %c0_24 = arith.constant 0 : index
    %c0_25 = arith.constant 0 : index
    %35 = vector.load %arg15[%c0_24, %c0_25] : memref<32x128xf32, #tpu.memory_space<vmem>>, vector<32x128xf32>
    %36 = vector.broadcast %28 : vector<1x128xf32> to vector<32x128xf32>
    %37 = arith.mulf %36, %35 : vector<32x128xf32>
    %38 = arith.truncf %26 : vector<64x128xf32> to vector<64x128xbf16>
    %cst_26 = arith.constant dense<0.000000e+00> : vector<32x128xf32>
    %39 = tpu.matmul %17, %38, %cst_26 {dimension_numbers = #tpu.dot_dimension_numbers<[1], [0], [0], [1], [0, 0, 1, 1], [], []>} : vector<32x64xbf16>, vector<64x128xbf16>, vector<32x128xf32> -> vector<32x128xf32>
    %40 = arith.addf %37, %39 : vector<32x128xf32>
    %c0_27 = arith.constant 0 : index
    %c0_28 = arith.constant 0 : index
    %41 = vector.load %arg15[%c0_27, %c0_28] : memref<32x128xf32, #tpu.memory_space<vmem>>, vector<32x128xf32>
    tpu.vector_store %arg15[%c0_27, %c0_28], %40 {strides = array<i32>} : memref<32x128xf32, #tpu.memory_space<vmem>>, vector<32x128xf32>,
    %c0_29 = arith.constant 0 : index
    %c0_30 = arith.constant 0 : index
    %42 = vector.load %arg13[%c0_29, %c0_30] : memref<1x128xf32, #tpu.memory_space<vmem>>, vector<1x128xf32>
    tpu.vector_store %arg13[%c0_29, %c0_30], %23 {strides = array<i32>} : memref<1x128xf32, #tpu.memory_space<vmem>>, vector<1x128xf32>,
    %c0_i32_31 = arith.constant 0 : i32
    %43 = arith.cmpi eq, %arg3, %c0_i32_31 : i32
    %44 = arith.extui %43 : i1 to i32
    %c0_i32_32 = arith.constant 0 : i32
    %45 = arith.cmpi ne, %44, %c0_i32_32 : i32
    scf.if %45 {
      %c0_33 = arith.constant 0 : index
      %c0_34 = arith.constant 0 : index
      %46 = vector.load %arg15[%c0_33, %c0_34] : memref<32x128xf32, #tpu.memory_space<vmem>>, vector<32x128xf32>
      %c0_35 = arith.constant 0 : index
      %c0_36 = arith.constant 0 : index
      %47 = vector.load %arg14[%c0_35, %c0_36] : memref<1x128xf32, #tpu.memory_space<vmem>>, vector<1x128xf32>
      %48 = tpu.reciprocal %47 {approx = true} : vector<1x128xf32> -> vector<1x128xf32>
      %49 = vector.broadcast %48 : vector<1x128xf32> to vector<32x128xf32>
      %50 = arith.mulf %46, %49 : vector<32x128xf32>
      %c0_37 = arith.constant 0 : index
      %c0_38 = arith.constant 0 : index
      %c0_39 = arith.constant 0 : index
      %51 = vector.load %arg11[%c0_37, %c0_38, %c0_39] : memref<1x8x128xf32, #tpu.memory_space<vmem>>, vector<1x8x128xf32>
      %52 = vector.shape_cast %51 : vector<1x8x128xf32> to vector<8x128xf32>
      %c0_40 = arith.constant 0 : index
      %c0_41 = arith.constant 0 : index
      %c0_42 = arith.constant 0 : index
      %53 = vector.load %arg9[%c0_40, %c0_41, %c0_42] : memref<1x8x32xbf16, #tpu.memory_space<vmem>>, vector<1x8x32xbf16>
      %54 = vector.shape_cast %53 : vector<1x8x32xbf16> to vector<8x32xbf16>
      %55 = arith.truncf %50 : vector<32x128xf32> to vector<32x128xbf16>
      %cst_43 = arith.constant dense<0.000000e+00> : vector<8x128xf32>
      %56 = tpu.matmul %54, %55, %cst_43 {dimension_numbers = #tpu.dot_dimension_numbers<[1], [0], [0], [1], [0, 0, 1, 1], [], []>} : vector<8x32xbf16>, vector<32x128xbf16>, vector<8x128xf32> -> vector<8x128xf32>
      %57 = arith.addf %52, %56 : vector<8x128xf32>
      %c0_44 = arith.constant 0 : index
      %c0_45 = arith.constant 0 : index
      %c0_46 = arith.constant 0 : index
      %58 = vector.load %arg11[%c0_44, %c0_45, %c0_46] : memref<1x8x128xf32, #tpu.memory_space<vmem>>, vector<1x8x128xf32>
      %59 = vector.shape_cast %58 : vector<1x8x128xf32> to vector<8x128xf32>
      %60 = vector.shape_cast %57 : vector<8x128xf32> to vector<1x8x128xf32>
      tpu.vector_store %arg11[%c0_44, %c0_45, %c0_46], %60 {strides = array<i32>} : memref<1x8x128xf32, #tpu.memory_space<vmem>>, vector<1x8x128xf32>,
    } else {
    }
    return
  }
  func.func @transform_0(%arg0: i32, %arg1: i32, %arg2: i32, %arg3: i32) -> (i32, i32, i32) {
    %c0_i32 = arith.constant 0 : i32
    %c0_i32_0 = arith.constant 0 : i32
    return %arg0, %c0_i32, %arg1 : i32, i32, i32
  }
  func.func @transform_1(%arg0: i32, %arg1: i32, %arg2: i32, %arg3: i32) -> (i32, i32, i32) {
    %c0_i32 = arith.constant 0 : i32
    %c0_i32_0 = arith.constant 0 : i32
    return %arg0, %c0_i32, %arg3 : i32, i32, i32
  }
  func.func @transform_2(%arg0: i32, %arg1: i32, %arg2: i32, %arg3: i32) -> (i32, i32, i32) {
    %c0_i32 = arith.constant 0 : i32
    %c0_i32_0 = arith.constant 0 : i32
    %c0_i32_1 = arith.constant 0 : i32
    return %arg2, %c0_i32, %c0_i32_0 : i32, i32, i32
  }
  func.func @transform_3(%arg0: i32, %arg1: i32, %arg2: i32, %arg3: i32) -> (i32, i32, i32) {
    %c0_i32 = arith.constant 0 : i32
    %c0_i32_0 = arith.constant 0 : i32
    %c0_i32_1 = arith.constant 0 : i32
    return %arg2, %c0_i32, %c0_i32_0 : i32, i32, i32
  }
  func.func @transform_4(%arg0: i32, %arg1: i32, %arg2: i32, %arg3: i32) -> (i32, i32, i32) {
    %c0_i32 = arith.constant 0 : i32
    %c0_i32_0 = arith.constant 0 : i32
    %c0_i32_1 = arith.constant 0 : i32
    return %arg2, %c0_i32, %c0_i32_0 : i32, i32, i32
  }
  func.func @transform_5(%arg0: i32, %arg1: i32, %arg2: i32, %arg3: i32) -> (i32, i32, i32) {
    %c0_i32 = arith.constant 0 : i32
    %c0_i32_0 = arith.constant 0 : i32
    %c0_i32_1 = arith.constant 0 : i32
    return %arg2, %c0_i32, %c0_i32_0 : i32, i32, i32
  }
  func.func @transform_6(%arg0: i32, %arg1: i32, %arg2: i32, %arg3: i32) -> (i32, i32) {
    %c0_i32 = arith.constant 0 : i32
    %c0_i32_0 = arith.constant 0 : i32
    %c0_i32_1 = arith.constant 0 : i32
    return %c0_i32, %c0_i32_0 : i32, i32
  }
  func.func @transform_7(%arg0: i32, %arg1: i32, %arg2: i32, %arg3: i32) -> (i32, i32, i32) {
    %c0_i32 = arith.constant 0 : i32
    %c0_i32_0 = arith.constant 0 : i32
    return %arg0, %c0_i32, %arg1 : i32, i32, i32
  }
}

</mosaic_0001>

<llo_original>
// kernel: tpu_custom_call.1
$region0: #{tpu_custom_call.1}
  #allocation0 [shape = 'u32[]', space=smem, size = 0x4, offset = 0x4, fixed_abs, tag = 'smem constant byte address 0x4 - core index']
  #allocation1 [shape = 'u32[144,128]{1,0:T(1,128)}', space=vmem, size = 0x12000, scoped, tag = 'internal scratch']
  #allocation2 [shape = 'bf16[32,128]{1,0:T(8,128)(2,1)}', space=vmem, size = 0x2000, scoped, tag = 'scratch operand']
  #allocation3 [shape = 'f32[1,128]{1,0:T(1,128)}', space=vmem, size = 0x200, scoped, tag = 'scratch operand']
  #allocation4 [shape = 'f32[1,128]{1,0:T(1,128)}', space=vmem, size = 0x200, scoped, tag = 'scratch operand']
  #allocation5 [shape = 'f32[32,128]{1,0:T(8,128)}', space=vmem, size = 0x4000, scoped, tag = 'scratch operand']
  %s0 = inlined_call_operand.vmem [shape: bf16[2,8,128], index: 0, kind: input, shape index: {}]
  %s1 = inlined_call_operand.vmem [shape: bf16[2,8,64], index: 1, kind: input, shape index: {}]
  %s2 = inlined_call_operand.vmem [shape: bf16[4,32,8], index: 2, kind: input, shape index: {}]
  %s3 = inlined_call_operand.vmem [shape: bf16[4,32,8], index: 3, kind: input, shape index: {}]
  %s4 = inlined_call_operand.vmem [shape: bf16[4,32,8], index: 4, kind: input, shape index: {}]
  %s5 = inlined_call_operand.vmem [shape: bf16[4,8,32], index: 5, kind: input, shape index: {}]
  %s6 = inlined_call_operand.vmem [shape: f32[8,1], index: 6, kind: input, shape index: {}]
  %s7 = inlined_call_operand.hbm [shape: f32[2,8,128], index: 7, kind: output, shape index: {}]
  %s8 = sld [smem:[#allocation0]]
  $region73: #{tpu_custom_call.1} parent=0
    _
  %s10 = ssub.s32 1, %s8
  %s11 = scalar_select 0, %s10, %s8
  $region1: #{tpu_custom_call.1} parent=0
    #allocation6 [shape = 'u8[8192]{0}', space=vmem, size = 0x2000, scoped, tag = 'output window, operand 0']
    #allocation7 [shape = 's32[2]{0}', space=sflag, size = 0x8, scoped, tag = 'scoped memory for tpu_custom_call.1']
    %12 = vsyncpa [#allocation7], 0
    %s13 = scalar_lea.sflag [#allocation7], 1
    %14 = vsyncpa %s13, 0
    loop: start=0, step=1, limit=10
    $region2: #{tpu_custom_call.1} parent=1 // loop_pre_header
      _
    $region3: #{tpu_custom_call.1} parent=1 // loop_header
      %s16 = sphi 0, %s20
      %p17 = scmp.ge.s32.totalorder %s16, 10
      %s23 = sphi 0, %s49
      %s24 = sphi 0, %s45
      %s25 = sphi 0, %s41
      %s26 = sphi 0, %s37
      %s27 = sphi 0, %s23
      %s28 = sphi 0, %s24
      %s29 = sphi 0, %s25
      %s30 = sphi 0, %s26
      %s31 = sphi 0, %s27
      %s32 = sphi 0, %s28
      %s33 = sphi 0, %s29
      %s34 = sphi 0, %s30
      %s54 = sphi 0, %s56
      %s57 = sphi 0, %s54
      %s58 = sphi 0, %s57
      %s74 = sphi 0, %s58
      %s82 = sphi 0, %s84
      %s85 = sphi 0, %s82
      %s86 = sphi 0, %s85
      %s102 = sphi 0, %s86
      %s108 = sphi 0, %s110
      %s111 = sphi 0, %s108
      %s112 = sphi 0, %s111
      %s128 = sphi 0, %s112
      %s134 = sphi 0, %s136
      %s137 = sphi 0, %s134
      %s138 = sphi 0, %s137
      %s154 = sphi 0, %s138
      %s160 = sphi 0, %s162
      %s163 = sphi 0, %s160
      %s164 = sphi 0, %s163
      %s180 = sphi 0, %s164
      %s186 = sphi 0, %s188
      %s189 = sphi 0, %s186
      %s190 = sphi 0, %s189
      %s206 = sphi 0, %s190
      %s210 = sphi 0, %s210
      %s212 = sphi 0, %s210
      %s213 = sphi 0, %s212
      %s227 = sphi 0, %s213
      %s235 = sphi 0, %s237
      %s238 = sphi 0, %s235
      %s239 = sphi 0, %s238
      %s255 = sphi 0, %s239
    $region4: #{tpu_custom_call.1} parent=1 // loop_header_branch
      %19 = sbr.rel (%p17) target = $region8
    $region5: #{tpu_custom_call.1} parent=1 // loop_body
      %s21 = ssub.s32 %s16, 1
      %s22 = ssub.s32 %s16, 2
      %s35 = sadd.s32 1, %s26
      %p36 = scmp.ge.s32.totalorder %s35, 1
      %s37 = scalar_select %p36, 0, %s35
      %s38 = sadd.s32 1, %s25
      %s39 = scalar_select %p36, %s38, %s25
      %p40 = scmp.ge.s32.totalorder %s39, 4
      %s41 = scalar_select %p40, 0, %s39
      %s42 = sadd.s32 1, %s24
      %s43 = scalar_select %p40, %s42, %s24
      %p44 = scmp.ge.s32.totalorder %s43, 1
      %s45 = scalar_select %p44, 0, %s43
      %s46 = sadd.s32 1, %s23
      %s47 = scalar_select %p44, %s46, %s23
      %p48 = scmp.ge.s32.totalorder %s47, 2
      %s49 = scalar_select %p48, 0, %s47
      %s50 = ssub.s32 %s23, %s49
      %s51 = ssub.s32 %s24, %s45
      %s52 = sor.u32 %s50, %s51
      %p53 = scmp.eq.s32.totalorder %s52, 0
      %s55 = sadd.s32 %s54, 1
      %s56 = scalar_select %p53, %s54, %s55
      %p59 = pneg %p53
      %p60 = scmp.eq.s32.totalorder %s16, 7
      %p61 = por %p59, %p60
      %p62 = scmp.ne.s32.totalorder %s54, %s57
      %p63 = scmp.eq.s32.totalorder %s16, 0
      %p64 = por %p62, %p63
      %p65 = scmp.ne.s32.totalorder %s54, %s57
      %p66 = scmp.eq.s32.totalorder %s21, 7
      %p67 = por %p65, %p66
      %p68 = scmp.ne.s32.totalorder %s57, %s58
      %p69 = scmp.eq.s32.totalorder %s21, 0
      %p70 = por %p68, %p69
      %p71 = scmp.ne.s32.totalorder %s57, %s58
      %p72 = scmp.eq.s32.totalorder %s22, 7
      %p73 = por %p71, %p72
      %p75 = scmp.ne.s32.totalorder %s58, %s74
      %p76 = scmp.eq.s32.totalorder %s22, 0
      %p77 = por %p75, %p76
      %s78 = ssub.s32 %s23, %s49
      %s79 = ssub.s32 %s26, %s37
      %s80 = sor.u32 %s78, %s79
      %p81 = scmp.eq.s32.totalorder %s80, 0
      %s83 = sadd.s32 %s82, 1
      %s84 = scalar_select %p81, %s82, %s83
      %p87 = pneg %p81
      %p88 = scmp.eq.s32.totalorder %s16, 7
      %p89 = por %p87, %p88
      %p90 = scmp.ne.s32.totalorder %s82, %s85
      %p91 = scmp.eq.s32.totalorder %s16, 0
      %p92 = por %p90, %p91
      %p93 = scmp.ne.s32.totalorder %s82, %s85
      %p94 = scmp.eq.s32.totalorder %s21, 7
      %p95 = por %p93, %p94
      %p96 = scmp.ne.s32.totalorder %s85, %s86
      %p97 = scmp.eq.s32.totalorder %s21, 0
      %p98 = por %p96, %p97
      %p99 = scmp.ne.s32.totalorder %s85, %s86
      %p100 = scmp.eq.s32.totalorder %s22, 7
      %p101 = por %p99, %p100
      %p103 = scmp.ne.s32.totalorder %s86, %s102
      %p104 = scmp.eq.s32.totalorder %s22, 0
      %p105 = por %p103, %p104
      %s106 = ssub.s32 %s25, %s41
      %p107 = scmp.eq.s32.totalorder %s106, 0
      %s109 = sadd.s32 %s108, 1
      %s110 = scalar_select %p107, %s108, %s109
      %p113 = pneg %p107
      %p114 = scmp.eq.s32.totalorder %s16, 7
      %p115 = por %p113, %p114
      %p116 = scmp.ne.s32.totalorder %s108, %s111
      %p117 = scmp.eq.s32.totalorder %s16, 0
      %p118 = por %p116, %p117
      %p119 = scmp.ne.s32.totalorder %s108, %s111
      %p120 = scmp.eq.s32.totalorder %s21, 7
      %p121 = por %p119, %p120
      %p122 = scmp.ne.s32.totalorder %s111, %s112
      %p123 = scmp.eq.s32.totalorder %s21, 0
      %p124 = por %p122, %p123
      %p125 = scmp.ne.s32.totalorder %s111, %s112
      %p126 = scmp.eq.s32.totalorder %s22, 7
      %p127 = por %p125, %p126
      %p129 = scmp.ne.s32.totalorder %s112, %s128
      %p130 = scmp.eq.s32.totalorder %s22, 0
      %p131 = por %p129, %p130
      %s132 = ssub.s32 %s25, %s41
      %p133 = scmp.eq.s32.totalorder %s132, 0
      %s135 = sadd.s32 %s134, 1
      %s136 = scalar_select %p133, %s134, %s135
      %p139 = pneg %p133
      %p140 = scmp.eq.s32.totalorder %s16, 7
      %p141 = por %p139, %p140
      %p142 = scmp.ne.s32.totalorder %s134, %s137
      %p143 = scmp.eq.s32.totalorder %s16, 0
      %p144 = por %p142, %p143
      %p145 = scmp.ne.s32.totalorder %s134, %s137
      %p146 = scmp.eq.s32.totalorder %s21, 7
      %p147 = por %p145, %p146
      %p148 = scmp.ne.s32.totalorder %s137, %s138
      %p149 = scmp.eq.s32.totalorder %s21, 0
      %p150 = por %p148, %p149
      %p151 = scmp.ne.s32.totalorder %s137, %s138
      %p152 = scmp.eq.s32.totalorder %s22, 7
      %p153 = por %p151, %p152
      %p155 = scmp.ne.s32.totalorder %s138, %s154
      %p156 = scmp.eq.s32.totalorder %s22, 0
      %p157 = por %p155, %p156
      %s158 = ssub.s32 %s25, %s41
      %p159 = scmp.eq.s32.totalorder %s158, 0
      %s161 = sadd.s32 %s160, 1
      %s162 = scalar_select %p159, %s160, %s161
      %p165 = pneg %p159
      %p166 = scmp.eq.s32.totalorder %s16, 7
      %p167 = por %p165, %p166
      %p168 = scmp.ne.s32.totalorder %s160, %s163
      %p169 = scmp.eq.s32.totalorder %s16, 0
      %p170 = por %p168, %p169
      %p171 = scmp.ne.s32.totalorder %s160, %s163
      %p172 = scmp.eq.s32.totalorder %s21, 7
      %p173 = por %p171, %p172
      %p174 = scmp.ne.s32.totalorder %s163, %s164
      %p175 = scmp.eq.s32.totalorder %s21, 0
      %p176 = por %p174, %p175
      %p177 = scmp.ne.s32.totalorder %s163, %s164
      %p178 = scmp.eq.s32.totalorder %s22, 7
      %p179 = por %p177, %p178
      %p181 = scmp.ne.s32.totalorder %s164, %s180
      %p182 = scmp.eq.s32.totalorder %s22, 0
      %p183 = por %p181, %p182
      %s184 = ssub.s32 %s25, %s41
      %p185 = scmp.eq.s32.totalorder %s184, 0
      %s187 = sadd.s32 %s186, 1
      %s188 = scalar_select %p185, %s186, %s187
      %p191 = pneg %p185
      %p192 = scmp.eq.s32.totalorder %s16, 7
      %p193 = por %p191, %p192
      %p194 = scmp.ne.s32.totalorder %s186, %s189
      %p195 = scmp.eq.s32.totalorder %s16, 0
      %p196 = por %p194, %p195
      %p197 = scmp.ne.s32.totalorder %s186, %s189
      %p198 = scmp.eq.s32.totalorder %s21, 7
      %p199 = por %p197, %p198
      %p200 = scmp.ne.s32.totalorder %s189, %s190
      %p201 = scmp.eq.s32.totalorder %s21, 0
      %p202 = por %p200, %p201
      %p203 = scmp.ne.s32.totalorder %s189, %s190
      %p204 = scmp.eq.s32.totalorder %s22, 7
      %p205 = por %p203, %p204
      %p207 = scmp.ne.s32.totalorder %s190, %s206
      %p208 = scmp.eq.s32.totalorder %s22, 0
      %p209 = por %p207, %p208
      %s211 = sadd.s32 %s210, 1
      %p214 = scmp.eq.s32.totalorder %s16, 7
      %p215 = scmp.ne.s32.totalorder %s210, %s212
      %p216 = scmp.eq.s32.totalorder %s16, 0
      %p217 = por %p215, %p216
      %p218 = scmp.ne.s32.totalorder %s210, %s212
      %p219 = scmp.eq.s32.totalorder %s21, 7
      %p220 = por %p218, %p219
      %p221 = scmp.ne.s32.totalorder %s212, %s213
      %p222 = scmp.eq.s32.totalorder %s21, 0
      %p223 = por %p221, %p222
      %p224 = scmp.ne.s32.totalorder %s212, %s213
      %p225 = scmp.eq.s32.totalorder %s22, 7
      %p226 = por %p224, %p225
      %p228 = scmp.ne.s32.totalorder %s213, %s227
      %p229 = scmp.eq.s32.totalorder %s22, 0
      %p230 = por %p228, %p229
      %s231 = ssub.s32 %s23, %s49
      %s232 = ssub.s32 %s24, %s45
      %s233 = sor.u32 %s231, %s232
      %p234 = scmp.eq.s32.totalorder %s233, 0
      %s236 = sadd.s32 %s235, 1
      %s237 = scalar_select %p234, %s235, %s236
      %p240 = pneg %p234
      %p241 = scmp.eq.s32.totalorder %s16, 7
      %p242 = por %p240, %p241
      %p243 = scmp.ne.s32.totalorder %s235, %s238
      %p244 = scmp.eq.s32.totalorder %s16, 0
      %p245 = por %p243, %p244
      %p246 = scmp.ne.s32.totalorder %s235, %s238
      %p247 = scmp.eq.s32.totalorder %s21, 7
      %p248 = por %p246, %p247
      %p249 = scmp.ne.s32.totalorder %s238, %s239
      %p250 = scmp.eq.s32.totalorder %s21, 0
      %p251 = por %p249, %p250
      %p252 = scmp.ne.s32.totalorder %s238, %s239
      %p253 = scmp.eq.s32.totalorder %s22, 7
      %p254 = por %p252, %p253
      %p256 = scmp.ne.s32.totalorder %s239, %s255
      %p257 = scmp.eq.s32.totalorder %s22, 0
      %p258 = por %p256, %p257
      %p259 = scmp.le.s32.totalorder 1, %s16
      %p260 = scmp.lt.s32.totalorder %s16, 9
      %p261 = pnand %p259, %p260
      %p262 = pneg %p261
      // Predicated region
      $region9: #{tpu_custom_call.1} parent=5 // pred_check
        _
      $region10: #{tpu_custom_call.1} parent=5 // pred_check_branch
        %264 = sbr.rel (%p261) target = $region12
      $region11: #{tpu_custom_call.1} parent=5 // pred_region
        %s265 = ssub.s32 %s16, 1
        // Predicated region
        $region13: #{tpu_custom_call.1} parent=11 // pred_check
          %p266 = pneg %p223
        $region14: #{tpu_custom_call.1} parent=11 // pred_check_branch
          %268 = sbr.rel (%p266) target = $region16
        $region15: #{tpu_custom_call.1} parent=11 // pred_region
          _
        $region16: #{tpu_custom_call.1} parent=11 // pred_fallthru
          _
      $region12: #{tpu_custom_call.1} parent=5 // pred_fallthru
        _
      %p269 = scmp.lt.s32.totalorder %s16, 8
      // Predicated region
      $region17: #{tpu_custom_call.1} parent=5 // pred_check
        %p270 = pneg %p269
      $region18: #{tpu_custom_call.1} parent=5 // pred_check_branch
        %272 = sbr.rel (%p270) target = $region20
      $region19: #{tpu_custom_call.1} parent=5 // pred_region
        // Predicated region
        $region21: #{tpu_custom_call.1} parent=19 // pred_check
          %p273 = pneg %p64
        $region22: #{tpu_custom_call.1} parent=19 // pred_check_branch
          %275 = sbr.rel (%p273) target = $region24
        $region23: #{tpu_custom_call.1} parent=19 // pred_region
          %p276 = scmp.lt.s32.totalorder %s23, 1
          %s277 = scalar_select %p276, %s23, 1
          %p278 = scmp.lt.s32.totalorder %s24, 0
          %s279 = scalar_select %p278, %s24, 0
          %s280 = sadd.s32 %s279, %s277
          %s281 = smul.addr %s280, 4
          %s282 = scalar_lea.vmem %s0, %s281
        $region24: #{tpu_custom_call.1} parent=19 // pred_fallthru
          _
        // Predicated region
        $region25: #{tpu_custom_call.1} parent=19 // pred_check
          %p283 = pneg %p92
        $region26: #{tpu_custom_call.1} parent=19 // pred_check_branch
          %285 = sbr.rel (%p283) target = $region28
        $region27: #{tpu_custom_call.1} parent=19 // pred_region
          %p286 = scmp.lt.s32.totalorder %s23, 1
          %s287 = scalar_select %p286, %s23, 1
          %p288 = scmp.lt.s32.totalorder %s26, 0
          %s289 = scalar_select %p288, %s26, 0
          %s290 = sadd.s32 %s289, %s287
          %s291 = smul.addr %s290, 4
          %s292 = scalar_lea.vmem %s1, %s291
        $region28: #{tpu_custom_call.1} parent=19 // pred_fallthru
          _
        // Predicated region
        $region29: #{tpu_custom_call.1} parent=19 // pred_check
          %p293 = pneg %p118
        $region30: #{tpu_custom_call.1} parent=19 // pred_check_branch
          %295 = sbr.rel (%p293) target = $region32
        $region31: #{tpu_custom_call.1} parent=19 // pred_region
          %p296 = scmp.lt.s32.totalorder %s25, 3
          %s297 = scalar_select %p296, %s25, 3
          %s298 = smul.addr %s297, 4
          %s299 = smul.addr %s298, 4
          %s300 = scalar_lea.vmem %s2, %s299
        $region32: #{tpu_custom_call.1} parent=19 // pred_fallthru
          _
        // Predicated region
        $region33: #{tpu_custom_call.1} parent=19 // pred_check
          %p301 = pneg %p144
        $region34: #{tpu_custom_call.1} parent=19 // pred_check_branch
          %303 = sbr.rel (%p301) target = $region36
        $region35: #{tpu_custom_call.1} parent=19 // pred_region
          %p304 = scmp.lt.s32.totalorder %s25, 3
          %s305 = scalar_select %p304, %s25, 3
          %s306 = smul.addr %s305, 4
          %s307 = smul.addr %s306, 4
          %s308 = scalar_lea.vmem %s3, %s307
        $region36: #{tpu_custom_call.1} parent=19 // pred_fallthru
          _
        // Predicated region
        $region37: #{tpu_custom_call.1} parent=19 // pred_check
          %p309 = pneg %p170
        $region38: #{tpu_custom_call.1} parent=19 // pred_check_branch
          %311 = sbr.rel (%p309) target = $region40
        $region39: #{tpu_custom_call.1} parent=19 // pred_region
          %p312 = scmp.lt.s32.totalorder %s25, 3
          %s313 = scalar_select %p312, %s25, 3
          %s314 = smul.addr %s313, 4
          %s315 = smul.addr %s314, 4
          %s316 = scalar_lea.vmem %s4, %s315
        $region40: #{tpu_custom_call.1} parent=19 // pred_fallthru
          _
        // Predicated region
        $region41: #{tpu_custom_call.1} parent=19 // pred_check
          %p317 = pneg %p196
        $region42: #{tpu_custom_call.1} parent=19 // pred_check_branch
          %319 = sbr.rel (%p317) target = $region44
        $region43: #{tpu_custom_call.1} parent=19 // pred_region
          %p320 = scmp.lt.s32.totalorder %s25, 3
          %s321 = scalar_select %p320, %s25, 3
          %s322 = smul.addr %s321, 4
          %s323 = scalar_lea.vmem %s5, %s322
        $region44: #{tpu_custom_call.1} parent=19 // pred_fallthru
          _
      $region20: #{tpu_custom_call.1} parent=5 // pred_fallthru
        _
      %p324 = scmp.le.s32.totalorder 1, %s16
      %p325 = scmp.lt.s32.totalorder %s16, 9
      %p326 = pnand %p324, %p325
      %p327 = pneg %p326
      // Predicated region
      $region45: #{tpu_custom_call.1} parent=5 // pred_check
        _
      $region46: #{tpu_custom_call.1} parent=5 // pred_check_branch
        %329 = sbr.rel (%p326) target = $region48
      $region47: #{tpu_custom_call.1} parent=5 // pred_region
        %s330 = ssub.s32 %s16, 1
        %p331 = scmp.lt.s32.totalorder %s27, 1
        %s332 = scalar_select %p331, %s27, 1
        %p333 = scmp.lt.s32.totalorder %s28, 0
        %s334 = scalar_select %p333, %s28, 0
        %s335 = sadd.s32 %s334, %s332
        %s336 = smul.addr %s335, 4
        %s337 = scalar_lea.vmem %s0, %s336
        %p338 = pneg %p70
        %p339 = pneg %p67
        %p340 = scmp.lt.s32.totalorder %s27, 1
        %s341 = scalar_select %p340, %s27, 1
        %p342 = scmp.lt.s32.totalorder %s30, 0
        %s343 = scalar_select %p342, %s30, 0
        %s344 = sadd.s32 %s343, %s341
        %s345 = smul.addr %s344, 4
        %s346 = scalar_lea.vmem %s1, %s345
        %p347 = pneg %p98
        %p348 = pneg %p95
        %p349 = scmp.lt.s32.totalorder %s29, 3
        %s350 = scalar_select %p349, %s29, 3
        %s351 = smul.addr %s350, 4
        %s352 = smul.addr %s351, 4
        %s353 = scalar_lea.vmem %s2, %s352
        %p354 = pneg %p124
        %p355 = pneg %p121
        %p356 = scmp.lt.s32.totalorder %s29, 3
        %s357 = scalar_select %p356, %s29, 3
        %s358 = smul.addr %s357, 4
        %s359 = smul.addr %s358, 4
        %s360 = scalar_lea.vmem %s3, %s359
        %p361 = pneg %p150
        %p362 = pneg %p147
        %p363 = scmp.lt.s32.totalorder %s29, 3
        %s364 = scalar_select %p363, %s29, 3
        %s365 = smul.addr %s364, 4
        %s366 = smul.addr %s365, 4
        %s367 = scalar_lea.vmem %s4, %s366
        %p368 = pneg %p176
        %p369 = pneg %p173
        %p370 = scmp.lt.s32.totalorder %s29, 3
        %s371 = scalar_select %p370, %s29, 3
        %s372 = smul.addr %s371, 4
        %s373 = scalar_lea.vmem %s5, %s372
        %p374 = pneg %p202
        %p375 = pneg %p199
        %p376 = pneg %p223
        %p377 = pneg %p220
        %p378 = pneg %p251
        %p379 = pneg %p248
        %s380 = sand.u32 %s238, 1
        %s381 = scalar_lea.sflag [#allocation7], %s380
        %s382 = sand.u32 %s238, 1
        %s383 = smul.addr %s382, 8
        %s384 = scalar_lea.vmem [#allocation6], %s383
        %p385 = scmp.lt.s32.totalorder %s27, 1
        %s386 = scalar_select %p385, %s27, 1
        %p387 = scmp.lt.s32.totalorder %s28, 0
        %s388 = scalar_select %p387, %s28, 0
        %s389 = sadd.s32 %s388, %s386
        %s390 = smul.addr %s389, 4
        %s391 = scalar_lea.vmem %s0, %s390
        %p392 = scmp.lt.s32.totalorder %s27, 1
        %s393 = scalar_select %p392, %s27, 1
        %p394 = scmp.lt.s32.totalorder %s30, 0
        %s395 = scalar_select %p394, %s30, 0
        %s396 = sadd.s32 %s395, %s393
        %s397 = smul.addr %s396, 4
        %s398 = scalar_lea.vmem %s1, %s397
        %p399 = scmp.lt.s32.totalorder %s29, 3
        %s400 = scalar_select %p399, %s29, 3
        %s401 = smul.addr %s400, 4
        %s402 = smul.addr %s401, 4
        %s403 = scalar_lea.vmem %s2, %s402
        %p404 = scmp.lt.s32.totalorder %s29, 3
        %s405 = scalar_select %p404, %s29, 3
        %s406 = smul.addr %s405, 4
        %s407 = smul.addr %s406, 4
        %s408 = scalar_lea.vmem %s3, %s407
        %p409 = scmp.lt.s32.totalorder %s29, 3
        %s410 = scalar_select %p409, %s29, 3
        %s411 = smul.addr %s410, 4
        %s412 = smul.addr %s411, 4
        %s413 = scalar_lea.vmem %s4, %s412
        %p414 = scmp.lt.s32.totalorder %s29, 3
        %s415 = scalar_select %p414, %s29, 3
        %s416 = smul.addr %s415, 4
        %s417 = scalar_lea.vmem %s5, %s416
        %p419 = scmp.eq.s32.totalorder %s29, 0
        %p420 = scmp.eq.s32.totalorder %s30, 0
        %p421 = pnand %p419, %p420
        %p422 = pneg %p421
        // Predicated region
        $region49: #{tpu_custom_call.1} parent=47 // pred_check
          _
        $region50: #{tpu_custom_call.1} parent=47 // pred_check_branch
          %424 = sbr.rel (%p421) target = $region52
        $region51: #{tpu_custom_call.1} parent=47 // pred_region
          %v425 = vld [vmem:[%s6] sm:$0xff]
          %427 = vset.pattern.permute.xlu0 0
          %428 = vperm.xlu0 %427, %v425
          %v429 = vpop.permute.xlu0 %428
          %431 = vst [vmem:[%s384] sm:$0xff] %v429
        $region52: #{tpu_custom_call.1} parent=47 // pred_fallthru
          _
        // Predicated region
        $region53: #{tpu_custom_call.1} parent=47 // pred_check
          %p432 = pneg %p420
        $region54: #{tpu_custom_call.1} parent=47 // pred_check_branch
          %434 = sbr.rel (%p432) target = $region56
        $region55: #{tpu_custom_call.1} parent=47 // pred_region
          %v435 = vld [vmem:[%s403] sm:$0xf]
          %v436 = vld [vmem:[%s403 + $0x4] sm:$0xf]
          %v437 = vld [vmem:[%s403 + $0x8] sm:$0xf]
          %v438 = vld [vmem:[%s403 + $0xc] sm:$0xf]
          %v439 = vld [vmem:[%s391] sm:$0xf]
          %v444 = vunpack.c.l.b16 %v435
          %v445 = vunpack.c.l.b16 %v436
          %v446 = vunpack.c.l.b16 %v437
          %v447 = vunpack.c.l.b16 %v438
          %v448 = vpack.c.b16 %v445, %v444
          %v449 = vpack.c.b16 %v447, %v446
          %vm450 = vcmask 64512
          %v452 = vsel %vm450, %v448, 0
          %v455 = vsel %vm450, %v449, 0
          %vm457 = vcmask 1043456
          %v459 = vsel %vm457, %v439, 0
          %461 = vmatprep.subr.bf16.mxu0 0
          %462 = vmatpush1.bf16.msra.mxu0 0
          %463 = vmatprep.subr.bf16.mxu0 0
          %464 = vmatpush1.bf16.msra.mxu0 0
          %465 = vmatprep.subr.bf16.mxu0 0
          %466 = vmatpush1.bf16.msra.mxu0 0
          %467 = vmatprep.subr.bf16.mxu0 0
          %468 = vmatpush1.bf16.msra.mxu0 0
          %469 = vmatprep.subr.bf16.mxu0 0
          %470 = vmatpush1.bf16.msra.mxu0 0
          %471 = vmatprep.subr.bf16.mxu0 0
          %472 = vmatpush1.bf16.msra.mxu0 0
          %473 = vmatprep.subr.bf16.mxu0 0
          %474 = vmatpush1.bf16.msra.mxu0 0
          %475 = vmatprep.subr.bf16.mxu0 0
          %476 = vmatpush1.bf16.msra.mxu0 %v459
          %477 = vmatprep.subr.bf16.mxu0 0
          %478 = vmatpush2.bf16.msra.mxu0 0
          %479 = vmatprep.subr.bf16.mxu0 0
          %480 = vmatpush2.bf16.msra.mxu0 0
          %481 = vmatprep.subr.bf16.mxu0 0
          %482 = vmatpush2.bf16.msra.mxu0 0
          %483 = vmatprep.subr.bf16.mxu0 0
          %484 = vmatpush2.bf16.msra.mxu0 0
          %485 = vmatprep.subr.bf16.mxu0 0
          %486 = vmatpush2.bf16.msra.mxu0 0
          %487 = vmatprep.subr.bf16.mxu0 0
          %488 = vmatpush2.bf16.msra.mxu0 0
          %489 = vmatprep.subr.bf16.mxu0 0
          %490 = vmatpush2.bf16.msra.mxu0 0
          %491 = vmatprep.subr.bf16.mxu0 0
          %492 = vmatpush2.bf16.msra.mxu0 0
          %493 = vmatprep.mubr.bf16.mxu0 0
          %494 = vmatmul.mubr.bf16.gmra.mxu0 %v452
          %v495 = vpop.f32.mrf.mxu0
          %v496 = vadd.f32 0.0, %v495
          %v497 = vpop.f32.mrf.mxu0
          %v498 = vpop.f32.mrf.mxu0
          %v499 = vadd.f32 0.0, %v498
          %v500 = vpop.f32.mrf.mxu0
          %501 = vmatprep.mubr.bf16.mxu0 0
          %502 = vmatmul.mubr.bf16.gmra.mxu0 %v455
          %v503 = vpop.f32.mrf.mxu0
          %v504 = vadd.f32 0.0, %v503
          %v505 = vpop.f32.mrf.mxu0
          %v506 = vpop.f32.mrf.mxu0
          %v507 = vadd.f32 0.0, %v506
          %v508 = vpop.f32.mrf.mxu0
          %509 = vdwg.mxu0
          %v510 = vpack.c.bf16 %v499, %v496
          %v511 = vpack.c.bf16 %v507, %v504
          %v514 = vunpack.c.l.b16 %v510
          %v515 = vunpack.c.h.b16 %v510
          %v516 = vunpack.c.l.b16 %v511
          %v517 = vunpack.c.h.b16 %v511
          %v518 = vpack.c.b16 %v514, %v514
          %v519 = vpack.c.b16 %v515, %v515
          %v520 = vpack.c.b16 %v516, %v516
          %v521 = vpack.c.b16 %v517, %v517
          %526 = vst [vmem:[#allocation2] sm:$0xf] %v518
          %527 = vst [vmem:[#allocation2 + $0x4] sm:$0xf] %v519
          %528 = vst [vmem:[#allocation2 + $0x8] sm:$0xf] %v520
          %529 = vst [vmem:[#allocation2 + $0xc] sm:$0xf] %v521
          %530 = vst [vmem:[#allocation3] sm:$0x1] -inf
          %531 = vst [vmem:[#allocation4] sm:$0x1] 0.0
          %532 = vst [vmem:[#allocation5] sm:$0xff] 0.0
          %533 = vst [vmem:[#allocation5 + $0x8] sm:$0xff] 0.0
          %534 = vst [vmem:[#allocation5 + $0x10] sm:$0xff] 0.0
          %535 = vst [vmem:[#allocation5 + $0x18] sm:$0xff] 0.0
        $region56: #{tpu_custom_call.1} parent=47 // pred_fallthru
          _
        %v536 = vld [vmem:[%s398] sm:$0xf]
        %v537 = vld [vmem:[%s408] sm:$0xf]
        %v538 = vld [vmem:[%s408 + $0x4] sm:$0xf]
        %v539 = vld [vmem:[%s408 + $0x8] sm:$0xf]
        %v540 = vld [vmem:[%s408 + $0xc] sm:$0xf]
        %v545 = vunpack.c.l.b16 %v537
        %v546 = vunpack.c.l.b16 %v538
        %v547 = vunpack.c.l.b16 %v539
        %v548 = vunpack.c.l.b16 %v540
        %v549 = vpack.c.b16 %v546, %v545
        %v550 = vpack.c.b16 %v548, %v547
        %vm551 = vcmask 64512
        %v553 = vsel %vm551, %v549, 0
        %v556 = vsel %vm551, %v550, 0
        %vm558 = vcmask 1043456
        %v560 = vsel %vm558, %v536, 0
        %562 = vmatprep.subr.bf16.mxu0 0
        %563 = vmatpush1.bf16.msra.mxu0 0
        %564 = vmatprep.subr.bf16.mxu0 0
        %565 = vmatpush1.bf16.msra.mxu0 0
        %566 = vmatprep.subr.bf16.mxu0 0
        %567 = vmatpush1.bf16.msra.mxu0 0
        %568 = vmatprep.subr.bf16.mxu0 0
        %569 = vmatpush1.bf16.msra.mxu0 0
        %570 = vmatprep.subr.bf16.mxu0 0
        %571 = vmatpush1.bf16.msra.mxu0 0
        %572 = vmatprep.subr.bf16.mxu0 0
        %573 = vmatpush1.bf16.msra.mxu0 0
        %574 = vmatprep.subr.bf16.mxu0 0
        %575 = vmatpush1.bf16.msra.mxu0 0
        %576 = vmatprep.subr.bf16.mxu0 0
        %577 = vmatpush1.bf16.msra.mxu0 %v560
        %578 = vmatprep.subr.bf16.mxu0 0
        %579 = vmatpush2.bf16.msra.mxu0 0
        %580 = vmatprep.subr.bf16.mxu0 0
        %581 = vmatpush2.bf16.msra.mxu0 0
        %582 = vmatprep.subr.bf16.mxu0 0
        %583 = vmatpush2.bf16.msra.mxu0 0
        %584 = vmatprep.subr.bf16.mxu0 0
        %585 = vmatpush2.bf16.msra.mxu0 0
        %586 = vmatprep.subr.bf16.mxu0 0
        %587 = vmatpush2.bf16.msra.mxu0 0
        %588 = vmatprep.subr.bf16.mxu0 0
        %589 = vmatpush2.bf16.msra.mxu0 0
        %590 = vmatprep.subr.bf16.mxu0 0
        %591 = vmatpush2.bf16.msra.mxu0 0
        %592 = vmatprep.subr.bf16.mxu0 0
        %593 = vmatpush2.bf16.msra.mxu0 0
        %594 = vmatprep.mubr.bf16.mxu0 0
        %595 = vmatmul.mubr.bf16.gmra.mxu0 %v553
        %v596 = vpop.f32.mrf.mxu0
        %v597 = vadd.f32 0.0, %v596
        %v598 = vpop.f32.mrf.mxu0
        %v599 = vpop.f32.mrf.mxu0
        %v600 = vadd.f32 0.0, %v599
        %v601 = vpop.f32.mrf.mxu0
        %602 = vmatprep.mubr.bf16.mxu0 0
        %603 = vmatmul.mubr.bf16.gmra.mxu0 %v556
        %v604 = vpop.f32.mrf.mxu0
        %v605 = vadd.f32 0.0, %v604
        %v606 = vpop.f32.mrf.mxu0
        %v607 = vpop.f32.mrf.mxu0
        %v608 = vadd.f32 0.0, %v607
        %v609 = vpop.f32.mrf.mxu0
        %610 = vdwg.mxu0
        %v611 = vpack.c.bf16 %v600, %v597
        %v612 = vpack.c.bf16 %v608, %v605
        %v613 = vld [vmem:[%s413] sm:$0xf]
        %v614 = vld [vmem:[%s413 + $0x4] sm:$0xf]
        %v615 = vld [vmem:[%s413 + $0x8] sm:$0xf]
        %v616 = vld [vmem:[%s413 + $0xc] sm:$0xf]
        %v621 = vunpack.c.l.b16 %v613
        %v622 = vunpack.c.l.b16 %v614
        %v623 = vunpack.c.l.b16 %v615
        %v624 = vunpack.c.l.b16 %v616
        %v625 = vpack.c.b16 %v622, %v621
        %v626 = vpack.c.b16 %v624, %v623
        %v628 = vsel %vm551, %v625, 0
        %v631 = vsel %vm551, %v626, 0
        %633 = vmatprep.subr.bf16.mxu0 0
        %634 = vmatpush1.bf16.msra.mxu0 0
        %635 = vmatprep.subr.bf16.mxu0 0
        %636 = vmatpush1.bf16.msra.mxu0 0
        %637 = vmatprep.subr.bf16.mxu0 0
        %638 = vmatpush1.bf16.msra.mxu0 0
        %639 = vmatprep.subr.bf16.mxu0 0
        %640 = vmatpush1.bf16.msra.mxu0 0
        %641 = vmatprep.subr.bf16.mxu0 0
        %642 = vmatpush1.bf16.msra.mxu0 0
        %643 = vmatprep.subr.bf16.mxu0 0
        %644 = vmatpush1.bf16.msra.mxu0 0
        %645 = vmatprep.subr.bf16.mxu0 0
        %646 = vmatpush1.bf16.msra.mxu0 0
        %647 = vmatprep.subr.bf16.mxu0 0
        %648 = vmatpush1.bf16.msra.mxu0 %v560
        %649 = vmatprep.subr.bf16.mxu0 0
        %650 = vmatpush2.bf16.msra.mxu0 0
        %651 = vmatprep.subr.bf16.mxu0 0
        %652 = vmatpush2.bf16.msra.mxu0 0
        %653 = vmatprep.subr.bf16.mxu0 0
        %654 = vmatpush2.bf16.msra.mxu0 0
        %655 = vmatprep.subr.bf16.mxu0 0
        %656 = vmatpush2.bf16.msra.mxu0 0
        %657 = vmatprep.subr.bf16.mxu0 0
        %658 = vmatpush2.bf16.msra.mxu0 0
        %659 = vmatprep.subr.bf16.mxu0 0
        %660 = vmatpush2.bf16.msra.mxu0 0
        %661 = vmatprep.subr.bf16.mxu0 0
        %662 = vmatpush2.bf16.msra.mxu0 0
        %663 = vmatprep.subr.bf16.mxu0 0
        %664 = vmatpush2.bf16.msra.mxu0 0
        %665 = vmatprep.mubr.bf16.mxu0 0
        %666 = vmatmul.mubr.bf16.gmra.mxu0 %v628
        %v667 = vpop.f32.mrf.mxu0
        %v668 = vadd.f32 0.0, %v667
        %v669 = vpop.f32.mrf.mxu0
        %v670 = vpop.f32.mrf.mxu0
        %v671 = vadd.f32 0.0, %v670
        %v672 = vpop.f32.mrf.mxu0
        %673 = vmatprep.mubr.bf16.mxu0 0
        %674 = vmatmul.mubr.bf16.gmra.mxu0 %v631
        %v675 = vpop.f32.mrf.mxu0
        %v676 = vadd.f32 0.0, %v675
        %v677 = vpop.f32.mrf.mxu0
        %v678 = vpop.f32.mrf.mxu0
        %v679 = vadd.f32 0.0, %v678
        %v680 = vpop.f32.mrf.mxu0
        %681 = vdwg.mxu0
        %v682 = vpack.c.bf16 %v671, %v668
        %v683 = vpack.c.bf16 %v679, %v676
        %v684 = vld [vmem:[#allocation2] sm:$0xf]
        %v685 = vld [vmem:[#allocation2 + $0x4] sm:$0xf]
        %v686 = vld [vmem:[#allocation2 + $0x8] sm:$0xf]
        %v687 = vld [vmem:[#allocation2 + $0xc] sm:$0xf]
        %688 = vxpose.xlu0.c.b16.start [1/8] %v611, 128
        %689 = vxpose.xlu0.c.b16.cont [2/8] %v612, 128
        %690 = vxpose.xlu0.c.b16.cont [3/8] 0, 128
        %691 = vxpose.xlu0.c.b16.cont [4/8] 0, 128
        %692 = vxpose.xlu0.c.b16.cont [5/8] 0, 128
        %693 = vxpose.xlu0.c.b16.cont [6/8] 0, 128
        %694 = vxpose.xlu0.c.b16.cont [7/8] 0, 128
        %695 = vxpose.xlu0.c.b16.end [8/8] 0, 128
        %v696 = vpop.trf.xlu0
        %v697 = vpop.trf.xlu0
        %v698 = vpop.trf.xlu0
        %v699 = vpop.trf.xlu0
        %v700 = vpop.trf.xlu0
        %v701 = vpop.trf.xlu0
        %v702 = vpop.trf.xlu0
        %v703 = vpop.trf.xlu0
        %v708 = vunpack.c.l.b16 %v684
        %v709 = vunpack.c.l.b16 %v685
        %v710 = vunpack.c.l.b16 %v686
        %v711 = vunpack.c.l.b16 %v687
        %v712 = vpack.c.b16 %v709, %v708
        %v713 = vpack.c.b16 %v711, %v710
        %vm716 = vcmask 261120
        %v718 = vsel %vm716, %v696, 0
        %v721 = vsel %vm716, %v697, 0
        %v724 = vsel %vm716, %v698, 0
        %v727 = vsel %vm716, %v699, 0
        %729 = vmatprep.subr.bf16.mxu0 0
        %730 = vmatpush1.bf16.msra.mxu0 0
        %731 = vmatprep.subr.bf16.mxu0 0
        %732 = vmatpush1.bf16.msra.mxu0 0
        %733 = vmatprep.subr.bf16.mxu0 0
        %734 = vmatpush1.bf16.msra.mxu0 0
        %735 = vmatprep.subr.bf16.mxu0 0
        %736 = vmatpush1.bf16.msra.mxu0 0
        %737 = vmatprep.subr.bf16.mxu0 0
        %738 = vmatpush1.bf16.msra.mxu0 0
        %739 = vmatprep.subr.bf16.mxu0 0
        %740 = vmatpush1.bf16.msra.mxu0 0
        %741 = vmatprep.subr.bf16.mxu0 0
        %742 = vmatpush1.bf16.msra.mxu0 %v713
        %743 = vmatprep.subr.bf16.mxu0 0
        %744 = vmatpush1.bf16.msra.mxu0 %v712
        %745 = vmatprep.subr.bf16.mxu0 0
        %746 = vmatpush2.bf16.msra.mxu0 0
        %747 = vmatprep.subr.bf16.mxu0 0
        %748 = vmatpush2.bf16.msra.mxu0 0
        %749 = vmatprep.subr.bf16.mxu0 0
        %750 = vmatpush2.bf16.msra.mxu0 0
        %751 = vmatprep.subr.bf16.mxu0 0
        %752 = vmatpush2.bf16.msra.mxu0 0
        %753 = vmatprep.subr.bf16.mxu0 0
        %754 = vmatpush2.bf16.msra.mxu0 0
        %755 = vmatprep.subr.bf16.mxu0 0
        %756 = vmatpush2.bf16.msra.mxu0 0
        %757 = vmatprep.subr.bf16.mxu0 0
        %758 = vmatpush2.bf16.msra.mxu0 0
        %759 = vmatprep.subr.bf16.mxu0 0
        %760 = vmatpush2.bf16.msra.mxu0 0
        %761 = vmatprep.mubr.bf16.mxu0 0
        %762 = vmatmul.mubr.bf16.gmra.mxu0 %v718
        %v763 = vpop.f32.mrf.mxu0
        %v764 = vadd.f32 0.0, %v763
        %v765 = vpop.f32.mrf.mxu0
        %v766 = vpop.f32.mrf.mxu0
        %v767 = vadd.f32 0.0, %v766
        %v768 = vpop.f32.mrf.mxu0
        %769 = vmatprep.mubr.bf16.mxu0 0
        %770 = vmatmul.mubr.bf16.gmra.mxu0 %v721
        %v771 = vpop.f32.mrf.mxu0
        %v772 = vadd.f32 0.0, %v771
        %v773 = vpop.f32.mrf.mxu0
        %v774 = vpop.f32.mrf.mxu0
        %v775 = vadd.f32 0.0, %v774
        %v776 = vpop.f32.mrf.mxu0
        %777 = vmatprep.mubr.bf16.mxu0 0
        %778 = vmatmul.mubr.bf16.gmra.mxu0 %v724
        %v779 = vpop.f32.mrf.mxu0
        %v780 = vadd.f32 0.0, %v779
        %v781 = vpop.f32.mrf.mxu0
        %v782 = vpop.f32.mrf.mxu0
        %v783 = vadd.f32 0.0, %v782
        %v784 = vpop.f32.mrf.mxu0
        %785 = vmatprep.mubr.bf16.mxu0 0
        %786 = vmatmul.mubr.bf16.gmra.mxu0 %v727
        %v787 = vpop.f32.mrf.mxu0
        %v788 = vadd.f32 0.0, %v787
        %v789 = vpop.f32.mrf.mxu0
        %v790 = vpop.f32.mrf.mxu0
        %v791 = vadd.f32 0.0, %v790
        %v792 = vpop.f32.mrf.mxu0
        %793 = vdwg.mxu0
        %v794 = vld [vmem:[#allocation3] sm:$0x1]
        %v795 = vmax.f32 %v764, %v780
        %v796 = vmax.f32 %v767, %v783
        %v797 = vmax.f32 %v772, %v788
        %v798 = vmax.f32 %v775, %v791
        %v799 = vmax.f32 %v795, %v796
        %v800 = vmax.f32 %v797, %v798
        %v801 = vmax.f32 %v799, %v800
        %v802 = vrot.slane %v801, 4
        %v803 = vmax.f32 %v801, %v802
        %v804 = vrot.slane %v803, 2
        %v805 = vmax.f32 %v803, %v804
        %v806 = vrot.slane %v805, 1
        %v807 = vmax.f32 %v805, %v806
        %v808 = vmax.f32 %v794, %v807
        %v810 = vlaneseq
        %v811 = vshrl.u32 %v810, 7
        %v812 = vsub.s32 0, %v811
        %v813 = vrot.slane %v808, %v812
        %v815 = vsub.f32 %v764, %v813
        %v816 = vsub.f32 %v767, %v813
        %v817 = vsub.f32 %v772, %v813
        %v818 = vsub.f32 %v775, %v813
        %v819 = vsub.f32 %v780, %v813
        %v820 = vsub.f32 %v783, %v813
        %v821 = vsub.f32 %v788, %v813
        %v822 = vsub.f32 %v791, %v813
        %v823 = vmul.f32 %v815, 1.442695
        %v824 = vpow.pop %v823
        %v825 = vmul.f32 %v816, 1.442695
        %v826 = vpow.pop %v825
        %v827 = vmul.f32 %v817, 1.442695
        %v828 = vpow.pop %v827
        %v829 = vmul.f32 %v818, 1.442695
        %v830 = vpow.pop %v829
        %v831 = vmul.f32 %v819, 1.442695
        %v832 = vpow.pop %v831
        %v833 = vmul.f32 %v820, 1.442695
        %v834 = vpow.pop %v833
        %v835 = vmul.f32 %v821, 1.442695
        %v836 = vpow.pop %v835
        %v837 = vmul.f32 %v822, 1.442695
        %v838 = vpow.pop %v837
        %v839 = vsub.f32 %v794, %v808
        %v840 = vmul.f32 %v839, 1.442695
        %v841 = vpow.pop %v840
        %v842 = vld [vmem:[#allocation4] sm:$0x1]
        %v843 = vmul.f32 %v841, %v842
        %v844 = vadd.f32 %v824, %v826
        %v845 = vadd.f32 %v844, %v828
        %v846 = vadd.f32 %v845, %v830
        %v847 = vadd.f32 %v846, %v832
        %v848 = vadd.f32 %v847, %v834
        %v849 = vadd.f32 %v848, %v836
        %v850 = vadd.f32 %v849, %v838
        %v851 = vrot.slane %v850, 4
        %v852 = vadd.f32 %v850, %v851
        %v853 = vrot.slane %v852, 2
        %v854 = vadd.f32 %v852, %v853
        %v855 = vrot.slane %v854, 1
        %v856 = vadd.f32 %v854, %v855
        %v857 = vadd.f32 %v843, %v856
        %858 = vst [vmem:[#allocation4] sm:$0x1] %v857
        %v859 = vld [vmem:[#allocation5] sm:$0xff]
        %v860 = vld [vmem:[#allocation5 + $0x8] sm:$0xff]
        %v861 = vld [vmem:[#allocation5 + $0x10] sm:$0xff]
        %v862 = vld [vmem:[#allocation5 + $0x18] sm:$0xff]
        %v864 = vlaneseq
        %v865 = vshrl.u32 %v864, 7
        %v866 = vsub.s32 0, %v865
        %v867 = vrot.slane %v841, %v866
        %v869 = vmul.f32 %v867, %v859
        %v870 = vmul.f32 %v867, %v860
        %v871 = vmul.f32 %v867, %v861
        %v872 = vmul.f32 %v867, %v862
        %v873 = vpack.c.bf16 %v826, %v824
        %v874 = vpack.c.bf16 %v830, %v828
        %v875 = vpack.c.bf16 %v834, %v832
        %v876 = vpack.c.bf16 %v838, %v836
        %vm877 = vcmask 523264
        %v879 = vsel %vm877, %v682, 0
        %v882 = vsel %vm877, %v683, 0
        %884 = vmatprep.subr.bf16.mxu0 0
        %885 = vmatpush1.bf16.msra.mxu0 0
        %886 = vmatprep.subr.bf16.mxu0 0
        %887 = vmatpush1.bf16.msra.mxu0 0
        %888 = vmatprep.subr.bf16.mxu0 0
        %889 = vmatpush1.bf16.msra.mxu0 0
        %890 = vmatprep.subr.bf16.mxu0 0
        %891 = vmatpush1.bf16.msra.mxu0 0
        %892 = vmatprep.subr.bf16.mxu0 0
        %893 = vmatpush1.bf16.msra.mxu0 %v876
        %894 = vmatprep.subr.bf16.mxu0 0
        %895 = vmatpush1.bf16.msra.mxu0 %v875
        %896 = vmatprep.subr.bf16.mxu0 0
        %897 = vmatpush1.bf16.msra.mxu0 %v874
        %898 = vmatprep.subr.bf16.mxu0 0
        %899 = vmatpush1.bf16.msra.mxu0 %v873
        %900 = vmatprep.subr.bf16.mxu0 0
        %901 = vmatpush2.bf16.msra.mxu0 0
        %902 = vmatprep.subr.bf16.mxu0 0
        %903 = vmatpush2.bf16.msra.mxu0 0
        %904 = vmatprep.subr.bf16.mxu0 0
        %905 = vmatpush2.bf16.msra.mxu0 0
        %906 = vmatprep.subr.bf16.mxu0 0
        %907 = vmatpush2.bf16.msra.mxu0 0
        %908 = vmatprep.subr.bf16.mxu0 0
        %909 = vmatpush2.bf16.msra.mxu0 0
        %910 = vmatprep.subr.bf16.mxu0 0
        %911 = vmatpush2.bf16.msra.mxu0 0
        %912 = vmatprep.subr.bf16.mxu0 0
        %913 = vmatpush2.bf16.msra.mxu0 0
        %914 = vmatprep.subr.bf16.mxu0 0
        %915 = vmatpush2.bf16.msra.mxu0 0
        %916 = vmatprep.mubr.bf16.mxu0 0
        %917 = vmatmul.mubr.bf16.gmra.mxu0 %v879
        %v918 = vpop.f32.mrf.mxu0
        %v919 = vadd.f32 0.0, %v918
        %v920 = vpop.f32.mrf.mxu0
        %v921 = vpop.f32.mrf.mxu0
        %v922 = vadd.f32 0.0, %v921
        %v923 = vpop.f32.mrf.mxu0
        %924 = vmatprep.mubr.bf16.mxu0 0
        %925 = vmatmul.mubr.bf16.gmra.mxu0 %v882
        %v926 = vpop.f32.mrf.mxu0
        %v927 = vadd.f32 0.0, %v926
        %v928 = vpop.f32.mrf.mxu0
        %v929 = vpop.f32.mrf.mxu0
        %v930 = vadd.f32 0.0, %v929
        %v931 = vpop.f32.mrf.mxu0
        %932 = vdwg.mxu0
        %v933 = vadd.f32 %v869, %v919
        %v934 = vadd.f32 %v870, %v922
        %v935 = vadd.f32 %v871, %v927
        %v936 = vadd.f32 %v872, %v930
        %937 = vst [vmem:[#allocation5] sm:$0xff] %v933
        %938 = vst [vmem:[#allocation5 + $0x8] sm:$0xff] %v934
        %939 = vst [vmem:[#allocation5 + $0x10] sm:$0xff] %v935
        %940 = vst [vmem:[#allocation5 + $0x18] sm:$0xff] %v936
        %941 = vst [vmem:[#allocation3] sm:$0x1] %v808
        // Predicated region
        $region57: #{tpu_custom_call.1} parent=47 // pred_check
          %p942 = pneg %p420
        $region58: #{tpu_custom_call.1} parent=47 // pred_check_branch
          %944 = sbr.rel (%p942) target = $region60
        $region59: #{tpu_custom_call.1} parent=47 // pred_region
          %v945 = vld [vmem:[#allocation5] sm:$0xff]
          %v946 = vld [vmem:[#allocation5 + $0x8] sm:$0xff]
          %v947 = vld [vmem:[#allocation5 + $0x10] sm:$0xff]
          %v948 = vld [vmem:[#allocation5 + $0x18] sm:$0xff]
          %v949 = vld [vmem:[#allocation4] sm:$0x1]
          %v950 = vrcp.pop %v949
          %v952 = vlaneseq
          %v953 = vshrl.u32 %v952, 7
          %v954 = vsub.s32 0, %v953
          %v955 = vrot.slane %v950, %v954
          %v957 = vmul.f32 %v945, %v955
          %v958 = vmul.f32 %v946, %v955
          %v959 = vmul.f32 %v947, %v955
          %v960 = vmul.f32 %v948, %v955
          %v961 = vld [vmem:[%s384] sm:$0xff]
          %v962 = vld [vmem:[%s417] sm:$0xf]
          %v963 = vpack.c.bf16 %v958, %v957
          %v964 = vpack.c.bf16 %v960, %v959
          %v966 = vsel %vm716, %v962, 0
          %968 = vmatprep.subr.bf16.mxu0 0
          %969 = vmatpush1.bf16.msra.mxu0 0
          %970 = vmatprep.subr.bf16.mxu0 0
          %971 = vmatpush1.bf16.msra.mxu0 0
          %972 = vmatprep.subr.bf16.mxu0 0
          %973 = vmatpush1.bf16.msra.mxu0 0
          %974 = vmatprep.subr.bf16.mxu0 0
          %975 = vmatpush1.bf16.msra.mxu0 0
          %976 = vmatprep.subr.bf16.mxu0 0
          %977 = vmatpush1.bf16.msra.mxu0 0
          %978 = vmatprep.subr.bf16.mxu0 0
          %979 = vmatpush1.bf16.msra.mxu0 0
          %980 = vmatprep.subr.bf16.mxu0 0
          %981 = vmatpush1.bf16.msra.mxu0 %v964
          %982 = vmatprep.subr.bf16.mxu0 0
          %983 = vmatpush1.bf16.msra.mxu0 %v963
          %984 = vmatprep.subr.bf16.mxu0 0
          %985 = vmatpush2.bf16.msra.mxu0 0
          %986 = vmatprep.subr.bf16.mxu0 0
          %987 = vmatpush2.bf16.msra.mxu0 0
          %988 = vmatprep.subr.bf16.mxu0 0
          %989 = vmatpush2.bf16.msra.mxu0 0
          %990 = vmatprep.subr.bf16.mxu0 0
          %991 = vmatpush2.bf16.msra.mxu0 0
          %992 = vmatprep.subr.bf16.mxu0 0
          %993 = vmatpush2.bf16.msra.mxu0 0
          %994 = vmatprep.subr.bf16.mxu0 0
          %995 = vmatpush2.bf16.msra.mxu0 0
          %996 = vmatprep.subr.bf16.mxu0 0
          %997 = vmatpush2.bf16.msra.mxu0 0
          %998 = vmatprep.subr.bf16.mxu0 0
          %999 = vmatpush2.bf16.msra.mxu0 0
          %1000 = vmatprep.mubr.bf16.mxu0 0
          %1001 = vmatmul.mubr.bf16.gmra.mxu0 %v966
          %v1002 = vpop.f32.mrf.mxu0
          %v1003 = vadd.f32 0.0, %v1002
          %v1004 = vpop.f32.mrf.mxu0
          %v1005 = vpop.f32.mrf.mxu0
          %v1006 = vpop.f32.mrf.mxu0
          %1007 = vdwg.mxu0
          %v1008 = vadd.f32 %v961, %v1003
          %1009 = vst [vmem:[%s384] sm:$0xff] %v1008
        $region60: #{tpu_custom_call.1} parent=47 // pred_fallthru
          _
        %s1010 = sand.u32 %s238, 1
        %s1011 = scalar_lea.sflag [#allocation7], %s1010
        %s1012 = sand.u32 %s238, 1
        %s1013 = smul.addr %s1012, 8
        %s1014 = scalar_lea.vmem [#allocation6], %s1013
        // Predicated region
        $region61: #{tpu_custom_call.1} parent=47 // pred_check
          %p1015 = pneg %p248
        $region62: #{tpu_custom_call.1} parent=47 // pred_check_branch
          %1017 = sbr.rel (%p1015) target = $region64
        $region63: #{tpu_custom_call.1} parent=47 // pred_region
          %s1019 = ssub.s32 128, 128
          %1020 = vsyncadd %s1011, %s1019
          %s1021 = sadd.s32 %s28, %s27
          %s1022 = smul.addr %s1021, 128
          %s1023 = scalar_lea.hbm %s7, %s1022
          %s1025 = sshll.u32 %s1014, 4
          %s1026 = int_to_ptr.vmem [resolvable:$true] %s1025
          %1028 = dma.vmem_to_hbm [thread:$0]  %s1026, 128, %s1023, %s1011
        $region64: #{tpu_custom_call.1} parent=47 // pred_fallthru
          _
      $region48: #{tpu_custom_call.1} parent=5 // pred_fallthru
        _
      %p1029 = scmp.le.s32.totalorder 2, %s16
      // Predicated region
      $region65: #{tpu_custom_call.1} parent=5 // pred_check
        %p1030 = pneg %p1029
      $region66: #{tpu_custom_call.1} parent=5 // pred_check_branch
        %1032 = sbr.rel (%p1030) target = $region68
      $region67: #{tpu_custom_call.1} parent=5 // pred_region
        %s1033 = ssub.s32 %s16, 2
        // Predicated region
        $region69: #{tpu_custom_call.1} parent=67 // pred_check
          %p1034 = pneg %p254
        $region70: #{tpu_custom_call.1} parent=67 // pred_check_branch
          %1036 = sbr.rel (%p1034) target = $region72
        $region71: #{tpu_custom_call.1} parent=67 // pred_region
          %s1037 = sand.u32 %s239, 1
          %s1038 = scalar_lea.sflag [#allocation7], %s1037
          %s1039 = sand.u32 %s239, 1
          %s1040 = smul.addr %s1039, 8
          %s1041 = scalar_lea.vmem [#allocation6], %s1040
          %1042 = dma.done %s1038, 128
        $region72: #{tpu_custom_call.1} parent=67 // pred_fallthru
          _
      $region68: #{tpu_custom_call.1} parent=5 // pred_fallthru
        _
    $region6: #{tpu_custom_call.1} parent=1 // loop_footer
      %s20 = sadd.s32 1, %s16
    $region7: #{tpu_custom_call.1} parent=1 // loop_footer_branch
      %15 = sbr.rel target = $region3
    $region8: #{tpu_custom_call.1} parent=1 // loop_exit
      _
    %1043 = vsyncpa [#allocation7], 1
    %s1044 = scalar_lea.sflag [#allocation7], 1
    %1045 = vsyncpa %s1044, 1

</llo_original>
